<compile_context>
chip_gen: v6e
topology: v6e:2x2x1
jax: 0.10.0
libtpu: 0.0.40
codegen_flags: <defaults>
</compile_context>

<pallas_src>
import jax
import jax.numpy as jnp
from jax.experimental import pallas as pl
from jax.experimental.pallas import tpu as pltpu

EPS = 1e-5
KSIZE = 3          # conv kernel size
POOL_K = 3         # maxpool kernel size
POOL_S = 2         # maxpool stride


# --------------------------------------------------------------------------
# Pass 1: Conv1d (valid, bias folded away) + BN1 partial statistics
# --------------------------------------------------------------------------
def _conv_stats_kernel(x_ref, w_ref, y_ref, stats_ref):
    # x_ref:     (1, Cin, L)        input tile (one batch element)
    # w_ref:     (Cout, Cin*K)      pre-laid-out weights (row order k*Cin + c)
    # y_ref:     (1, Cout, Lc)      conv output tile
    # stats_ref: (1, Cout, 2)       per-channel [sum, sumsq] partial stats
    xs = x_ref[0]                                  # (Cin, L)
    L = xs.shape[1]
    Lc = L - KSIZE + 1

    # im2col along the channel (sublane) axis -> single MXU contraction over Cin*K
    rhs = jnp.concatenate([xs[:, k:k + Lc] for k in range(KSIZE)], axis=0)  # (Cin*K, Lc)
    # NOTE: on v6e/v7x, casting w_ref[...]/rhs to bfloat16 here (keeping
    # preferred_element_type=f32) gives 2-4x MXU throughput at reduced precision.
    y = jnp.dot(w_ref[...], rhs, preferred_element_type=jnp.float32)        # (Cout, Lc)
    y_ref[0] = y

    # single-sweep BN1 partial stats (sum, sum of squares) per channel
    s = jnp.sum(y, axis=1, keepdims=True)          # (Cout, 1)
    ss = jnp.sum(y * y, axis=1, keepdims=True)     # (Cout, 1)
    stats_ref[0] = jnp.concatenate([s, ss], axis=1)


# --------------------------------------------------------------------------
# Pass 2: BN1 normalize (folded scale/shift) + ReLU + MaxPool(3,2)
#         + BN2 partial statistics
# --------------------------------------------------------------------------
def _bn_relu_pool_kernel(y_ref, p1_ref, p_ref, stats_ref):
    # y_ref:     (1, Cout, Lc)      conv output tile
    # p1_ref:    (Cout, 2)          packed [scale1, shift1] (BN1 folded affine)
    # p_ref:     (1, Cout, Lp)      pooled output tile
    # stats_ref: (1, Cout, 2)       per-channel [sum, sumsq] partial stats of p
    y = y_ref[0]                                   # (Cout, Lc)
    scale = p1_ref[:, 0:1]                         # (Cout, 1)
    shift = p1_ref[:, 1:2]                         # (Cout, 1)
    a = jnp.maximum(y * scale + shift, 0.0)        # BN1 + ReLU   (Cout, Lc)

    Lp = p_ref.shape[2]
    W = 2 * Lp - 1                                 # 2*Lp + 1 <= Lc always holds
    # vectorized 3-tap window max: m[:, l] = max(a[l], a[l+1], a[l+2])
    m = jnp.maximum(a[:, 0:W], jnp.maximum(a[:, 1:1 + W], a[:, 2:2 + W]))   # (Cout, W)

    # stride-2 column selection (p[:, j] = m[:, 2j]) via one-hot matmul:
    # exact, guaranteed lowering, and runs on the otherwise-idle MXU.
    rows = jax.lax.broadcasted_iota(jnp.int32, (W, Lp), 0)
    cols = jax.lax.broadcasted_iota(jnp.int32, (W, Lp), 1)
    sel = (rows == 2 * cols).astype(jnp.float32)   # (W, Lp) one-hot
    p = jnp.dot(m, sel, preferred_element_type=jnp.float32)                # (Cout, Lp)
    p_ref[0] = p

    s = jnp.sum(p, axis=1, keepdims=True)
    ss = jnp.sum(p * p, axis=1, keepdims=True)
    stats_ref[0] = jnp.concatenate([s, ss], axis=1)


# --------------------------------------------------------------------------
# Pass 3: BN2 normalize (folded scale/shift)
# --------------------------------------------------------------------------
def _bn2_kernel(p_ref, p2_ref, o_ref):
    # p_ref: (1, Cout, Lp); p2_ref: (Cout, 2); o_ref: (1, Cout, Lp)
    o_ref[0] = p_ref[0] * p2_ref[:, 0:1] + p2_ref[:, 1:2]


# --------------------------------------------------------------------------
# Wrapper
# --------------------------------------------------------------------------
def _fold_bn(stats, n, gamma, beta):
    """Combine per-tile partial [sum, sumsq] into a per-channel (scale, shift)."""
    sums = jnp.sum(stats, axis=0)                          # (Cout, 2)
    mu = sums[:, 0] / n
    var = jnp.maximum(sums[:, 1] / n - mu * mu, 0.0)       # E[x^2] - E[x]^2
    scale = gamma * jax.lax.rsqrt(var + EPS)
    shift = beta - mu * scale
    return jnp.stack([scale, shift], axis=1).astype(jnp.float32)   # (Cout, 2)


@jax.jit
def convolution_block(x, w, bias, gamma1, beta1, gamma2, beta2):
    B, Cin, L = x.shape
    Cout = w.shape[0]
    Lc = L - KSIZE + 1
    Lp = (Lc - POOL_K) // POOL_S + 1

    x = x.astype(jnp.float32)
    # Weight pre-layout: (Cout, Cin, K) -> (Cout, K*Cin), matching the in-kernel
    # im2col row order [k*Cin + c]; avoids lane-slicing a 3-lane weight array.
    w2 = jnp.transpose(w.astype(jnp.float32), (0, 2, 1)).reshape(Cout, KSIZE * Cin)
    # The conv bias is a per-channel constant, exactly cancelled by BN1's
    # training-mode batch-mean subtraction, so it never enters the kernels.
    # (If this block were ever run in eval mode with running stats, restore it.)
    _ = bias

    parallel = pltpu.CompilerParams(dimension_semantics=("parallel",))

    # ---- Pass 1: conv + BN1 partial stats (tiled over batch) ----
    y, stats1 = pl.pallas_call(
        _conv_stats_kernel,
        out_shape=(jax.ShapeDtypeStruct((B, Cout, Lc), jnp.float32),
                   jax.ShapeDtypeStruct((B, Cout, 2), jnp.float32)),
        grid=(B,),
        in_specs=[pl.BlockSpec((1, Cin, L), lambda i: (i, 0, 0)),
                  pl.BlockSpec((Cout, KSIZE * Cin), lambda i: (0, 0))],
        out_specs=(pl.BlockSpec((1, Cout, Lc), lambda i: (i, 0, 0)),
                   pl.BlockSpec((1, Cout, 2), lambda i: (i, 0, 0))),
        compiler_params=parallel,
    )(x, w2)

    # tiny (Cout-sized) global stat combine + BN1 affine fold, in plain JAX
    params1 = _fold_bn(stats1, B * Lc,
                       gamma1.astype(jnp.float32), beta1.astype(jnp.float32))

    # ---- Pass 2: BN1 normalize + ReLU + MaxPool + BN2 partial stats ----
    p, stats2 = pl.pallas_call(
        _bn_relu_pool_kernel,
        out_shape=(jax.ShapeDtypeStruct((B, Cout, Lp), jnp.float32),
                   jax.ShapeDtypeStruct((B, Cout, 2), jnp.float32)),
        grid=(B,),
        in_specs=[pl.BlockSpec((1, Cout, Lc), lambda i: (i, 0, 0)),
                  pl.BlockSpec((Cout, 2), lambda i: (0, 0))],
        out_specs=(pl.BlockSpec((1, Cout, Lp), lambda i: (i, 0, 0)),
                   pl.BlockSpec((1, Cout, 2), lambda i: (i, 0, 0))),
        compiler_params=parallel,
    )(y, params1)

    params2 = _fold_bn(stats2, B * Lp,
                       gamma2.astype(jnp.float32), beta2.astype(jnp.float32))

    # ---- Pass 3: BN2 normalize ----
    out = pl.pallas_call(
        _bn2_kernel,
        out_shape=jax.ShapeDtypeStruct((B, Cout, Lp), jnp.float32),
        grid=(B,),
        in_specs=[pl.BlockSpec((1, Cout, Lp), lambda i: (i, 0, 0)),
                  pl.BlockSpec((Cout, 2), lambda i: (0, 0))],
        out_specs=pl.BlockSpec((1, Cout, Lp), lambda i: (i, 0, 0)),
        compiler_params=parallel,
    )(p, params2)

    return out


# --------------------------------------------------------------------------
# Pure-JAX reference mirroring the PyTorch forward (training-mode BN, with bias)
# --------------------------------------------------------------------------
def _reference(x, w, bias, g1, b1, g2, b2):
    B, Cin, L = x.shape
    Cout = w.shape[0]
    Lc = L - KSIZE + 1
    y = jnp.zeros((B, Cout, Lc), jnp.float32)
    for k in range(KSIZE):
        y = y + jnp.einsum('oc,bcl->bol', w[:, :, k], x[:, :, k:k + Lc])
    y = y + bias[None, :, None]

    def bn(t, g, b):
        mu = jnp.mean(t, axis=(0, 2), keepdims=True)
        var = jnp.mean((t - mu) ** 2, axis=(0, 2), keepdims=True)
        return (t - mu) / jnp.sqrt(var + EPS) * g[None, :, None] + b[None, :, None]

    y = jnp.maximum(bn(y, g1, b1), 0.0)
    Lp = (Lc - POOL_K) // POOL_S + 1
    p = jnp.stack([jnp.max(y[:, :, POOL_S * l:POOL_S * l + POOL_K], axis=-1)
                   for l in range(Lp)], axis=-1)
    return bn(p, g2, b2)


if __name__ == "__main__":
    B, Cin, Cout, L = 2, 4, 8, 16

    key = jax.random.PRNGKey(0)
    kx, kw, kb, kg1, kb1, kg2, kb2 = jax.random.split(key, 7)

    x = jax.random.normal(kx, (B, Cin, L), dtype=jnp.float32)

    # PyTorch Conv1d default init: U(-1/sqrt(fan_in), +1/sqrt(fan_in))
    fan_in = Cin * KSIZE
    bound = (1.0 / fan_in) ** 0.5
    w = jax.random.uniform(kw, (Cout, Cin, KSIZE), jnp.float32, -bound, bound)
    bias = jax.random.uniform(kb, (Cout,), jnp.float32, -bound, bound)
    # non-trivial BN affine params (exercise the fold); training-mode batch stats
    gamma1 = jax.random.uniform(kg1, (Cout,), jnp.float32, 0.5, 1.5)
    beta1 = 0.1 * jax.random.normal(kb1, (Cout,), jnp.float32)
    gamma2 = jax.random.uniform(kg2, (Cout,), jnp.float32, 0.5, 1.5)
    beta2 = 0.1 * jax.random.normal(kb2, (Cout,), jnp.float32)

    out = convolution_block(x, w, bias, gamma1, beta1, gamma2, beta2)
    out = jax.block_until_ready(out)

    ref = _reference(x, w, bias, gamma1, beta1, gamma2, beta2)
    assert out.shape == ref.shape
    assert jnp.allclose(out, ref, atol=1e-4, rtol=1e-4), "mismatch vs reference"

    print("KERNEL_OK")
</pallas_src>

<mosaic_0001>
module attributes {stable_mosaic.version = 11 : i64} {
  func.func @_conv_stats_kernel(%arg0: i32, %arg1: memref<1x4x16xf32, #tpu.memory_space<vmem>>, %arg2: memref<8x12xf32, #tpu.memory_space<vmem>>, %arg3: memref<1x8x14xf32, #tpu.memory_space<vmem>>, %arg4: memref<1x8x2xf32, #tpu.memory_space<vmem>>) attributes {dimension_semantics = [#tpu.dimension_semantics<parallel>], iteration_bounds = array<i64: 2>, scalar_prefetch = 0 : i64, scratch_operands = 0 : i64, tpu.core_type = #tpu.core_type<tc>, window_params = [{transform_indices = @transform_0, window_bounds = array<i64: 1, 4, 16>}, {pipeline_mode = #tpu.pipeline_mode<synchronous>, transform_indices = @transform_1, window_bounds = array<i64: 8, 12>}, {transform_indices = @transform_2, window_bounds = array<i64: 1, 8, 14>}, {transform_indices = @transform_3, window_bounds = array<i64: 1, 8, 2>}]} {
    %c0 = arith.constant 0 : index
    %c0_0 = arith.constant 0 : index
    %c0_1 = arith.constant 0 : index
    %0 = vector.load %arg1[%c0, %c0_0, %c0_1] : memref<1x4x16xf32, #tpu.memory_space<vmem>>, vector<1x4x16xf32>
    %1 = vector.shape_cast %0 : vector<1x4x16xf32> to vector<4x16xf32>
    %2 = vector.extract_strided_slice %1 {offsets = [0, 0], sizes = [4, 14], strides = [1, 1]} : vector<4x16xf32> to vector<4x14xf32>
    %3 = vector.extract_strided_slice %1 {offsets = [0, 1], sizes = [4, 14], strides = [1, 1]} : vector<4x16xf32> to vector<4x14xf32>
    %4 = vector.extract_strided_slice %1 {offsets = [0, 2], sizes = [4, 14], strides = [1, 1]} : vector<4x16xf32> to vector<4x14xf32>
    %5 = tpu.concatenate %2, %3, %4 in 0 : vector<4x14xf32>, vector<4x14xf32>, vector<4x14xf32> -> vector<12x14xf32>
    %c0_2 = arith.constant 0 : index
    %c0_3 = arith.constant 0 : index
    %6 = vector.load %arg2[%c0_2, %c0_3] : memref<8x12xf32, #tpu.memory_space<vmem>>, vector<8x12xf32>
    %cst = arith.constant dense<0.000000e+00> : vector<8x14xf32>
    %7 = tpu.matmul %6, %5, %cst {dimension_numbers = #tpu.dot_dimension_numbers<[1], [0], [0], [1], [0, 0, 1, 1], [], []>} : vector<8x12xf32>, vector<12x14xf32>, vector<8x14xf32> -> vector<8x14xf32>
    %c0_4 = arith.constant 0 : index
    %c0_5 = arith.constant 0 : index
    %c0_6 = arith.constant 0 : index
    %8 = vector.load %arg3[%c0_4, %c0_5, %c0_6] : memref<1x8x14xf32, #tpu.memory_space<vmem>>, vector<1x8x14xf32>
    %9 = vector.shape_cast %8 : vector<1x8x14xf32> to vector<8x14xf32>
    %10 = vector.shape_cast %7 : vector<8x14xf32> to vector<1x8x14xf32>
    tpu.vector_store %arg3[%c0_4, %c0_5, %c0_6], %10 {strides = array<i32>} : memref<1x8x14xf32, #tpu.memory_space<vmem>>, vector<1x8x14xf32>,
    %cst_7 = arith.constant dense<0.000000e+00> : vector<8xf32>
    %11 = vector.multi_reduction <add>, %7, %cst_7 [1] : vector<8x14xf32> to vector<8xf32>
    %12 = vector.shape_cast %11 : vector<8xf32> to vector<8x1xf32>
    %13 = arith.mulf %7, %7 : vector<8x14xf32>
    %cst_8 = arith.constant dense<0.000000e+00> : vector<8xf32>
    %14 = vector.multi_reduction <add>, %13, %cst_8 [1] : vector<8x14xf32> to vector<8xf32>
    %15 = vector.shape_cast %14 : vector<8xf32> to vector<8x1xf32>
    %16 = tpu.concatenate %12, %15 in 1 : vector<8x1xf32>, vector<8x1xf32> -> vector<8x2xf32>
    %c0_9 = arith.constant 0 : index
    %c0_10 = arith.constant 0 : index
    %c0_11 = arith.constant 0 : index
    %17 = vector.load %arg4[%c0_9, %c0_10, %c0_11] : memref<1x8x2xf32, #tpu.memory_space<vmem>>, vector<1x8x2xf32>
    %18 = vector.shape_cast %17 : vector<1x8x2xf32> to vector<8x2xf32>
    %19 = vector.shape_cast %16 : vector<8x2xf32> to vector<1x8x2xf32>
    tpu.vector_store %arg4[%c0_9, %c0_10, %c0_11], %19 {strides = array<i32>} : memref<1x8x2xf32, #tpu.memory_space<vmem>>, vector<1x8x2xf32>,
    return
  }
  func.func @transform_0(%arg0: i32) -> (i32, i32, i32) {
    %c0_i32 = arith.constant 0 : i32
    %c0_i32_0 = arith.constant 0 : i32
    %c0_i32_1 = arith.constant 0 : i32
    return %arg0, %c0_i32, %c0_i32_0 : i32, i32, i32
  }
  func.func @transform_1(%arg0: i32) -> (i32, i32) {
    %c0_i32 = arith.constant 0 : i32
    %c0_i32_0 = arith.constant 0 : i32
    %c0_i32_1 = arith.constant 0 : i32
    return %c0_i32, %c0_i32_0 : i32, i32
  }
  func.func @transform_2(%arg0: i32) -> (i32, i32, i32) {
    %c0_i32 = arith.constant 0 : i32
    %c0_i32_0 = arith.constant 0 : i32
    %c0_i32_1 = arith.constant 0 : i32
    return %arg0, %c0_i32, %c0_i32_0 : i32, i32, i32
  }
  func.func @transform_3(%arg0: i32) -> (i32, i32, i32) {
    %c0_i32 = arith.constant 0 : i32
    %c0_i32_0 = arith.constant 0 : i32
    %c0_i32_1 = arith.constant 0 : i32
    return %arg0, %c0_i32, %c0_i32_0 : i32, i32, i32
  }
}

module attributes {stable_mosaic.version = 11 : i64} {
  func.func @_bn_relu_pool_kernel(%arg0: i32, %arg1: memref<1x8x14xf32, #tpu.memory_space<vmem>>, %arg2: memref<8x2xf32, #tpu.memory_space<vmem>>, %arg3: memref<1x8x6xf32, #tpu.memory_space<vmem>>, %arg4: memref<1x8x2xf32, #tpu.memory_space<vmem>>) attributes {dimension_semantics = [#tpu.dimension_semantics<parallel>], iteration_bounds = array<i64: 2>, scalar_prefetch = 0 : i64, scratch_operands = 0 : i64, tpu.core_type = #tpu.core_type<tc>, window_params = [{transform_indices = @transform_0, window_bounds = array<i64: 1, 8, 14>}, {pipeline_mode = #tpu.pipeline_mode<synchronous>, transform_indices = @transform_1, window_bounds = array<i64: 8, 2>}, {transform_indices = @transform_2, window_bounds = array<i64: 1, 8, 6>}, {transform_indices = @transform_3, window_bounds = array<i64: 1, 8, 2>}]} {
    %c0 = arith.constant 0 : index
    %c0_0 = arith.constant 0 : index
    %c0_1 = arith.constant 0 : index
    %0 = vector.load %arg1[%c0, %c0_0, %c0_1] : memref<1x8x14xf32, #tpu.memory_space<vmem>>, vector<1x8x14xf32>
    %1 = vector.shape_cast %0 : vector<1x8x14xf32> to vector<8x14xf32>
    %c0_2 = arith.constant 0 : index
    %c0_3 = arith.constant 0 : index
    %2 = vector.load %arg2[%c0_2, %c0_3] : memref<8x2xf32, #tpu.memory_space<vmem>>, vector<8x1xf32>
    %c0_4 = arith.constant 0 : index
    %c1 = arith.constant 1 : index
    %3 = vector.load %arg2[%c0_4, %c1] : memref<8x2xf32, #tpu.memory_space<vmem>>, vector<8x1xf32>
    %4 = vector.broadcast %2 : vector<8x1xf32> to vector<8x14xf32>
    %5 = arith.mulf %1, %4 : vector<8x14xf32>
    %6 = vector.broadcast %3 : vector<8x1xf32> to vector<8x14xf32>
    %7 = arith.addf %5, %6 : vector<8x14xf32>
    %cst = arith.constant 0.000000e+00 : f32
    %8 = vector.broadcast %cst : f32 to vector<8x14xf32>
    %9 = arith.maximumf %7, %8 : vector<8x14xf32>
    %10 = vector.extract_strided_slice %9 {offsets = [0, 0], sizes = [8, 11], strides = [1, 1]} : vector<8x14xf32> to vector<8x11xf32>
    %11 = vector.extract_strided_slice %9 {offsets = [0, 1], sizes = [8, 11], strides = [1, 1]} : vector<8x14xf32> to vector<8x11xf32>
    %12 = vector.extract_strided_slice %9 {offsets = [0, 2], sizes = [8, 11], strides = [1, 1]} : vector<8x14xf32> to vector<8x11xf32>
    %13 = arith.maximumf %11, %12 : vector<8x11xf32>
    %14 = arith.maximumf %10, %13 : vector<8x11xf32>
    %15 = tpu.iota {dimensions = array<i32: 0>} : vector<11x6xi32>
    %16 = tpu.iota {dimensions = array<i32: 1>} : vector<11x6xi32>
    %c2_i32 = arith.constant 2 : i32
    %17 = vector.broadcast %c2_i32 : i32 to vector<11x6xi32>
    %18 = arith.muli %17, %16 : vector<11x6xi32>
    %19 = arith.cmpi eq, %15, %18 : vector<11x6xi32>
    %20 = arith.extui %19 : vector<11x6xi1> to vector<11x6xi32>
    %21 = arith.sitofp %20 : vector<11x6xi32> to vector<11x6xf32>
    %cst_5 = arith.constant dense<0.000000e+00> : vector<8x6xf32>
    %22 = tpu.matmul %14, %21, %cst_5 {dimension_numbers = #tpu.dot_dimension_numbers<[1], [0], [0], [1], [0, 0, 1, 1], [], []>} : vector<8x11xf32>, vector<11x6xf32>, vector<8x6xf32> -> vector<8x6xf32>
    %c0_6 = arith.constant 0 : index
    %c0_7 = arith.constant 0 : index
    %c0_8 = arith.constant 0 : index
    %23 = vector.load %arg3[%c0_6, %c0_7, %c0_8] : memref<1x8x6xf32, #tpu.memory_space<vmem>>, vector<1x8x6xf32>
    %24 = vector.shape_cast %23 : vector<1x8x6xf32> to vector<8x6xf32>
    %25 = vector.shape_cast %22 : vector<8x6xf32> to vector<1x8x6xf32>
    tpu.vector_store %arg3[%c0_6, %c0_7, %c0_8], %25 {strides = array<i32>} : memref<1x8x6xf32, #tpu.memory_space<vmem>>, vector<1x8x6xf32>,
    %cst_9 = arith.constant dense<0.000000e+00> : vector<8xf32>
    %26 = vector.multi_reduction <add>, %22, %cst_9 [1] : vector<8x6xf32> to vector<8xf32>
    %27 = vector.shape_cast %26 : vector<8xf32> to vector<8x1xf32>
    %28 = arith.mulf %22, %22 : vector<8x6xf32>
    %cst_10 = arith.constant dense<0.000000e+00> : vector<8xf32>
    %29 = vector.multi_reduction <add>, %28, %cst_10 [1] : vector<8x6xf32> to vector<8xf32>
    %30 = vector.shape_cast %29 : vector<8xf32> to vector<8x1xf32>
    %31 = tpu.concatenate %27, %30 in 1 : vector<8x1xf32>, vector<8x1xf32> -> vector<8x2xf32>
    %c0_11 = arith.constant 0 : index
    %c0_12 = arith.constant 0 : index
    %c0_13 = arith.constant 0 : index
    %32 = vector.load %arg4[%c0_11, %c0_12, %c0_13] : memref<1x8x2xf32, #tpu.memory_space<vmem>>, vector<1x8x2xf32>
    %33 = vector.shape_cast %32 : vector<1x8x2xf32> to vector<8x2xf32>
    %34 = vector.shape_cast %31 : vector<8x2xf32> to vector<1x8x2xf32>
    tpu.vector_store %arg4[%c0_11, %c0_12, %c0_13], %34 {strides = array<i32>} : memref<1x8x2xf32, #tpu.memory_space<vmem>>, vector<1x8x2xf32>,
    return
  }
  func.func @transform_0(%arg0: i32) -> (i32, i32, i32) {
    %c0_i32 = arith.constant 0 : i32
    %c0_i32_0 = arith.constant 0 : i32
    %c0_i32_1 = arith.constant 0 : i32
    return %arg0, %c0_i32, %c0_i32_0 : i32, i32, i32
  }
  func.func @transform_1(%arg0: i32) -> (i32, i32) {
    %c0_i32 = arith.constant 0 : i32
    %c0_i32_0 = arith.constant 0 : i32
    %c0_i32_1 = arith.constant 0 : i32
    return %c0_i32, %c0_i32_0 : i32, i32
  }
  func.func @transform_2(%arg0: i32) -> (i32, i32, i32) {
    %c0_i32 = arith.constant 0 : i32
    %c0_i32_0 = arith.constant 0 : i32
    %c0_i32_1 = arith.constant 0 : i32
    return %arg0, %c0_i32, %c0_i32_0 : i32, i32, i32
  }
  func.func @transform_3(%arg0: i32) -> (i32, i32, i32) {
    %c0_i32 = arith.constant 0 : i32
    %c0_i32_0 = arith.constant 0 : i32
    %c0_i32_1 = arith.constant 0 : i32
    return %arg0, %c0_i32, %c0_i32_0 : i32, i32, i32
  }
}

module attributes {stable_mosaic.version = 11 : i64} {
  func.func @_bn2_kernel(%arg0: i32, %arg1: memref<1x8x6xf32, #tpu.memory_space<vmem>>, %arg2: memref<8x2xf32, #tpu.memory_space<vmem>>, %arg3: memref<1x8x6xf32, #tpu.memory_space<vmem>>) attributes {dimension_semantics = [#tpu.dimension_semantics<parallel>], iteration_bounds = array<i64: 2>, scalar_prefetch = 0 : i64, scratch_operands = 0 : i64, tpu.core_type = #tpu.core_type<tc>, window_params = [{transform_indices = @transform_0, window_bounds = array<i64: 1, 8, 6>}, {pipeline_mode = #tpu.pipeline_mode<synchronous>, transform_indices = @transform_1, window_bounds = array<i64: 8, 2>}, {transform_indices = @transform_2, window_bounds = array<i64: 1, 8, 6>}]} {
    %c0 = arith.constant 0 : index
    %c0_0 = arith.constant 0 : index
    %c0_1 = arith.constant 0 : index
    %0 = vector.load %arg1[%c0, %c0_0, %c0_1] : memref<1x8x6xf32, #tpu.memory_space<vmem>>, vector<1x8x6xf32>
    %1 = vector.shape_cast %0 : vector<1x8x6xf32> to vector<8x6xf32>
    %c0_2 = arith.constant 0 : index
    %c0_3 = arith.constant 0 : index
    %2 = vector.load %arg2[%c0_2, %c0_3] : memref<8x2xf32, #tpu.memory_space<vmem>>, vector<8x1xf32>
    %3 = vector.broadcast %2 : vector<8x1xf32> to vector<8x6xf32>
    %4 = arith.mulf %1, %3 : vector<8x6xf32>
    %c0_4 = arith.constant 0 : index
    %c1 = arith.constant 1 : index
    %5 = vector.load %arg2[%c0_4, %c1] : memref<8x2xf32, #tpu.memory_space<vmem>>, vector<8x1xf32>
    %6 = vector.broadcast %5 : vector<8x1xf32> to vector<8x6xf32>
    %7 = arith.addf %4, %6 : vector<8x6xf32>
    %c0_5 = arith.constant 0 : index
    %c0_6 = arith.constant 0 : index
    %c0_7 = arith.constant 0 : index
    %8 = vector.load %arg3[%c0_5, %c0_6, %c0_7] : memref<1x8x6xf32, #tpu.memory_space<vmem>>, vector<1x8x6xf32>
    %9 = vector.shape_cast %8 : vector<1x8x6xf32> to vector<8x6xf32>
    %10 = vector.shape_cast %7 : vector<8x6xf32> to vector<1x8x6xf32>
    tpu.vector_store %arg3[%c0_5, %c0_6, %c0_7], %10 {strides = array<i32>} : memref<1x8x6xf32, #tpu.memory_space<vmem>>, vector<1x8x6xf32>,
    return
  }
  func.func @transform_0(%arg0: i32) -> (i32, i32, i32) {
    %c0_i32 = arith.constant 0 : i32
    %c0_i32_0 = arith.constant 0 : i32
    %c0_i32_1 = arith.constant 0 : i32
    return %arg0, %c0_i32, %c0_i32_0 : i32, i32, i32
  }
  func.func @transform_1(%arg0: i32) -> (i32, i32) {
    %c0_i32 = arith.constant 0 : i32
    %c0_i32_0 = arith.constant 0 : i32
    %c0_i32_1 = arith.constant 0 : i32
    return %c0_i32, %c0_i32_0 : i32, i32
  }
  func.func @transform_2(%arg0: i32) -> (i32, i32, i32) {
    %c0_i32 = arith.constant 0 : i32
    %c0_i32_0 = arith.constant 0 : i32
    %c0_i32_1 = arith.constant 0 : i32
    return %arg0, %c0_i32, %c0_i32_0 : i32, i32, i32
  }
}

</mosaic_0001>

<llo_original>
// kernel: convolution_block.3
$region0: #{convolution_block.3}
  #allocation0 [shape = 'u32[]', space=smem, size = 0x4, offset = 0x4, fixed_abs, tag = 'smem constant byte address 0x4 - core index']
  #allocation1 [shape = 'u32[144,128]{1,0:T(1,128)}', space=vmem, size = 0x12000, scoped, tag = 'internal scratch']
  %s0 = inlined_call_operand.vmem [shape: f32[2,4,16], index: 0, kind: input, shape index: {}]
  %s1 = inlined_call_operand.vmem [shape: f32[8,12], index: 1, kind: input, shape index: {}]
  %s2 = inlined_call_operand.vmem [shape: f32[2,8,14], index: 2, kind: output, shape index: {0}]
  %s3 = inlined_call_operand.vmem [shape: f32[2,8,2], index: 3, kind: output, shape index: {1}]
  %4 = xla_tuple %s2, %s3
  %s5 = sld [smem:[#allocation0]]
  $region49: #{convolution_block.3} parent=0
    _
  %s7 = ssub.s32 1, %s5
  %s8 = scalar_select 0, %s7, %s5
  loop: start=0, step=1, limit=4
  $region2: #{convolution_block.3} parent=0 // loop_pre_header
    _
  $region3: #{convolution_block.3} parent=0 // loop_header
    %s10 = sphi 0, %s14
    %p11 = scmp.ge.s32.totalorder %s10, 4
    %s20 = sphi 0, %s22
    %s23 = sphi 0, %s20
    %s24 = sphi 0, %s23
    %s40 = sphi 0, %s24
    %s44 = sphi 0, %s44
    %s46 = sphi 0, %s44
    %s47 = sphi 0, %s46
    %s61 = sphi 0, %s47
    %s67 = sphi 0, %s69
    %s70 = sphi 0, %s67
    %s71 = sphi 0, %s70
    %s87 = sphi 0, %s71
    %s93 = sphi 0, %s95
    %s96 = sphi 0, %s93
    %s97 = sphi 0, %s96
    %s113 = sphi 0, %s97
  $region4: #{convolution_block.3} parent=0 // loop_header_branch
    %13 = sbr.rel (%p11) target = $region8
  $region5: #{convolution_block.3} parent=0 // loop_body
    %s15 = ssub.s32 %s10, 1
    %s16 = ssub.s32 %s10, 2
    %s17 = sadd.s32 %s10, 1
    %s18 = ssub.s32 %s10, %s17
    %p19 = scmp.eq.s32.totalorder %s18, 0
    %s21 = sadd.s32 %s20, 1
    %s22 = scalar_select %p19, %s20, %s21
    %p25 = pneg %p19
    %p26 = scmp.eq.s32.totalorder %s10, 1
    %p27 = por %p25, %p26
    %p28 = scmp.ne.s32.totalorder %s20, %s23
    %p29 = scmp.eq.s32.totalorder %s10, 0
    %p30 = por %p28, %p29
    %p31 = scmp.ne.s32.totalorder %s20, %s23
    %p32 = scmp.eq.s32.totalorder %s15, 1
    %p33 = por %p31, %p32
    %p34 = scmp.ne.s32.totalorder %s23, %s24
    %p35 = scmp.eq.s32.totalorder %s15, 0
    %p36 = por %p34, %p35
    %p37 = scmp.ne.s32.totalorder %s23, %s24
    %p38 = scmp.eq.s32.totalorder %s16, 1
    %p39 = por %p37, %p38
    %p41 = scmp.ne.s32.totalorder %s24, %s40
    %p42 = scmp.eq.s32.totalorder %s16, 0
    %p43 = por %p41, %p42
    %s45 = sadd.s32 %s44, 1
    %p48 = scmp.eq.s32.totalorder %s10, 1
    %p49 = scmp.ne.s32.totalorder %s44, %s46
    %p50 = scmp.eq.s32.totalorder %s10, 0
    %p51 = por %p49, %p50
    %p52 = scmp.ne.s32.totalorder %s44, %s46
    %p53 = scmp.eq.s32.totalorder %s15, 1
    %p54 = por %p52, %p53
    %p55 = scmp.ne.s32.totalorder %s46, %s47
    %p56 = scmp.eq.s32.totalorder %s15, 0
    %p57 = por %p55, %p56
    %p58 = scmp.ne.s32.totalorder %s46, %s47
    %p59 = scmp.eq.s32.totalorder %s16, 1
    %p60 = por %p58, %p59
    %p62 = scmp.ne.s32.totalorder %s47, %s61
    %p63 = scmp.eq.s32.totalorder %s16, 0
    %p64 = por %p62, %p63
    %s65 = ssub.s32 %s10, %s17
    %p66 = scmp.eq.s32.totalorder %s65, 0
    %s68 = sadd.s32 %s67, 1
    %s69 = scalar_select %p66, %s67, %s68
    %p72 = pneg %p66
    %p73 = scmp.eq.s32.totalorder %s10, 1
    %p74 = por %p72, %p73
    %p75 = scmp.ne.s32.totalorder %s67, %s70
    %p76 = scmp.eq.s32.totalorder %s10, 0
    %p77 = por %p75, %p76
    %p78 = scmp.ne.s32.totalorder %s67, %s70
    %p79 = scmp.eq.s32.totalorder %s15, 1
    %p80 = por %p78, %p79
    %p81 = scmp.ne.s32.totalorder %s70, %s71
    %p82 = scmp.eq.s32.totalorder %s15, 0
    %p83 = por %p81, %p82
    %p84 = scmp.ne.s32.totalorder %s70, %s71
    %p85 = scmp.eq.s32.totalorder %s16, 1
    %p86 = por %p84, %p85
    %p88 = scmp.ne.s32.totalorder %s71, %s87
    %p89 = scmp.eq.s32.totalorder %s16, 0
    %p90 = por %p88, %p89
    %s91 = ssub.s32 %s10, %s17
    %p92 = scmp.eq.s32.totalorder %s91, 0
    %s94 = sadd.s32 %s93, 1
    %s95 = scalar_select %p92, %s93, %s94
    %p98 = pneg %p92
    %p99 = scmp.eq.s32.totalorder %s10, 1
    %p100 = por %p98, %p99
    %p101 = scmp.ne.s32.totalorder %s93, %s96
    %p102 = scmp.eq.s32.totalorder %s10, 0
    %p103 = por %p101, %p102
    %p104 = scmp.ne.s32.totalorder %s93, %s96
    %p105 = scmp.eq.s32.totalorder %s15, 1
    %p106 = por %p104, %p105
    %p107 = scmp.ne.s32.totalorder %s96, %s97
    %p108 = scmp.eq.s32.totalorder %s15, 0
    %p109 = por %p107, %p108
    %p110 = scmp.ne.s32.totalorder %s96, %s97
    %p111 = scmp.eq.s32.totalorder %s16, 1
    %p112 = por %p110, %p111
    %p114 = scmp.ne.s32.totalorder %s97, %s113
    %p115 = scmp.eq.s32.totalorder %s16, 0
    %p116 = por %p114, %p115
    %p117 = scmp.le.s32.totalorder 1, %s10
    %p118 = scmp.lt.s32.totalorder %s10, 3
    %p119 = pnand %p117, %p118
    %p120 = pneg %p119
    // Predicated region
    $region9: #{convolution_block.3} parent=5 // pred_check
      _
    $region10: #{convolution_block.3} parent=5 // pred_check_branch
      %122 = sbr.rel (%p119) target = $region12
    $region11: #{convolution_block.3} parent=5 // pred_region
      %s123 = ssub.s32 %s10, 1
      // Predicated region
      $region13: #{convolution_block.3} parent=11 // pred_check
        %p124 = pneg %p57
      $region14: #{convolution_block.3} parent=11 // pred_check_branch
        %126 = sbr.rel (%p124) target = $region16
      $region15: #{convolution_block.3} parent=11 // pred_region
        _
      $region16: #{convolution_block.3} parent=11 // pred_fallthru
        _
    $region12: #{convolution_block.3} parent=5 // pred_fallthru
      _
    %p127 = scmp.lt.s32.totalorder %s10, 2
    // Predicated region
    $region17: #{convolution_block.3} parent=5 // pred_check
      %p128 = pneg %p127
    $region18: #{convolution_block.3} parent=5 // pred_check_branch
      %130 = sbr.rel (%p128) target = $region20
    $region19: #{convolution_block.3} parent=5 // pred_region
      // Predicated region
      $region21: #{convolution_block.3} parent=19 // pred_check
        %p131 = pneg %p30
      $region22: #{convolution_block.3} parent=19 // pred_check_branch
        %133 = sbr.rel (%p131) target = $region24
      $region23: #{convolution_block.3} parent=19 // pred_region
        %p134 = scmp.lt.s32.totalorder %s10, 1
        %s135 = scalar_select %p134, %s10, 1
        %s136 = smul.addr %s135, 4
        %s137 = scalar_lea.vmem %s0, %s136
      $region24: #{convolution_block.3} parent=19 // pred_fallthru
        _
    $region20: #{convolution_block.3} parent=5 // pred_fallthru
      _
    %p138 = scmp.le.s32.totalorder 1, %s10
    %p139 = scmp.lt.s32.totalorder %s10, 3
    %p140 = pnand %p138, %p139
    %p141 = pneg %p140
    // Predicated region
    $region25: #{convolution_block.3} parent=5 // pred_check
      _
    $region26: #{convolution_block.3} parent=5 // pred_check_branch
      %143 = sbr.rel (%p140) target = $region28
    $region27: #{convolution_block.3} parent=5 // pred_region
      %s144 = ssub.s32 %s10, 1
      %p145 = scmp.lt.s32.totalorder %s15, 1
      %s146 = scalar_select %p145, %s15, 1
      %s147 = smul.addr %s146, 4
      %s148 = scalar_lea.vmem %s0, %s147
      %p149 = pneg %p36
      %p150 = pneg %p33
      %p151 = pneg %p57
      %p152 = pneg %p54
      %p153 = pneg %p83
      %p154 = pneg %p80
      %p155 = scmp.lt.s32.totalorder %s15, 1
      %s156 = scalar_select %p155, %s15, 1
      %s157 = smul.addr %s156, 8
      %s158 = scalar_lea.vmem %s2, %s157
      %p159 = pneg %p109
      %p160 = pneg %p106
      %p161 = scmp.lt.s32.totalorder %s15, 1
      %s162 = scalar_select %p161, %s15, 1
      %s163 = smul.addr %s162, 8
      %s164 = scalar_lea.vmem %s3, %s163
      %p165 = scmp.lt.s32.totalorder %s15, 1
      %s166 = scalar_select %p165, %s15, 1
      %s167 = smul.addr %s166, 4
      %s168 = scalar_lea.vmem %s0, %s167
      %p169 = scmp.lt.s32.totalorder %s15, 1
      %s170 = scalar_select %p169, %s15, 1
      %s171 = smul.addr %s170, 8
      %s172 = scalar_lea.vmem %s2, %s171
      %p173 = scmp.lt.s32.totalorder %s15, 1
      %s174 = scalar_select %p173, %s15, 1
      %s175 = smul.addr %s174, 8
      %s176 = scalar_lea.vmem %s3, %s175
      %v177 = vld [vmem:[%s168] sm:$0xf]
      %v179 = vrot.slane %v177, 4
      %180 = vrot.lane.b32.xlu0 %v179, 127
      %v181 = vpop.permute.xlu0 %180
      %183 = vrot.lane.b32.xlu0 %v177, 126
      %v184 = vpop.permute.xlu0 %183
      %vm185 = vcmask 1043456
      %v186 = vsel %vm185, %v177, %v181
      %v187 = vld [vmem:[%s1] sm:$0xff]
      %vm188 = vcmask 97280
      %v190 = vsel %vm188, %v187, 0
      %v192 = vsel %vm185, %v184, 0
      %194 = vmatprep.subr.mxu0 0.0
      %195 = vmatpush1.msra.mxu0 0.0
      %196 = vmatprep.subr.mxu0 0.0
      %197 = vmatpush1.msra.mxu0 0.0
      %198 = vmatprep.subr.mxu0 0.0
      %199 = vmatpush1.msra.mxu0 0.0
      %200 = vmatprep.subr.mxu0 0.0
      %201 = vmatpush1.msra.mxu0 0.0
      %202 = vmatprep.subr.mxu0 0.0
      %203 = vmatpush1.msra.mxu0 0.0
      %204 = vmatprep.subr.mxu0 0.0
      %205 = vmatpush1.msra.mxu0 0.0
      %206 = vmatprep.subr.mxu0 0.0
      %207 = vmatpush1.msra.mxu0 0.0
      %208 = vmatprep.subr.mxu0 0.0
      %209 = vmatpush1.msra.mxu0 0.0
      %210 = vmatprep.subr.mxu0 0.0
      %211 = vmatpush1.msra.mxu0 0.0
      %212 = vmatprep.subr.mxu0 0.0
      %213 = vmatpush1.msra.mxu0 0.0
      %214 = vmatprep.subr.mxu0 0.0
      %215 = vmatpush1.msra.mxu0 0.0
      %216 = vmatprep.subr.mxu0 0.0
      %217 = vmatpush1.msra.mxu0 0.0
      %218 = vmatprep.subr.mxu0 0.0
      %219 = vmatpush1.msra.mxu0 0.0
      %220 = vmatprep.subr.mxu0 0.0
      %221 = vmatpush1.msra.mxu0 0.0
      %222 = vmatprep.subr.mxu0 0.0
      %223 = vmatpush1.msra.mxu0 %v192
      %224 = vmatprep.subr.mxu0 0.0
      %225 = vmatpush1.msra.mxu0 %v186
      %226 = vmatprep.subr.mxu0 0.0
      %227 = vmatpush2.msra.mxu0 0.0
      %228 = vmatprep.subr.mxu0 0.0
      %229 = vmatpush2.msra.mxu0 0.0
      %230 = vmatprep.subr.mxu0 0.0
      %231 = vmatpush2.msra.mxu0 0.0
      %232 = vmatprep.subr.mxu0 0.0
      %233 = vmatpush2.msra.mxu0 0.0
      %234 = vmatprep.subr.mxu0 0.0
      %235 = vmatpush2.msra.mxu0 0.0
      %236 = vmatprep.subr.mxu0 0.0
      %237 = vmatpush2.msra.mxu0 0.0
      %238 = vmatprep.subr.mxu0 0.0
      %239 = vmatpush2.msra.mxu0 0.0
      %240 = vmatprep.subr.mxu0 0.0
      %241 = vmatpush2.msra.mxu0 0.0
      %242 = vmatprep.subr.mxu0 0.0
      %243 = vmatpush2.msra.mxu0 0.0
      %244 = vmatprep.subr.mxu0 0.0
      %245 = vmatpush2.msra.mxu0 0.0
      %246 = vmatprep.subr.mxu0 0.0
      %247 = vmatpush2.msra.mxu0 0.0
      %248 = vmatprep.subr.mxu0 0.0
      %249 = vmatpush2.msra.mxu0 0.0
      %250 = vmatprep.subr.mxu0 0.0
      %251 = vmatpush2.msra.mxu0 0.0
      %252 = vmatprep.subr.mxu0 0.0
      %253 = vmatpush2.msra.mxu0 0.0
      %254 = vmatprep.subr.mxu0 0.0
      %255 = vmatpush2.msra.mxu0 0.0
      %256 = vmatprep.subr.mxu0 0.0
      %257 = vmatpush2.msra.mxu0 0.0
      %258 = vmatprep.mubr.f32.mxu0 0.0
      %259 = vmatmul.mubr.f32.gmra.mxu0 %v190
      %v260 = vpop.f32.mrf.mxu0
      %v261 = vadd.f32 0.0, %v260
      %v262 = vpop.f32.mrf.mxu0
      %263 = vdwg.mxu0
      %vm264 = vcmask 113664
      %265 = vst.msk [vmem:[%s172] sm:$0xff] %vm264, %v261
      %v266 = vsel %vm264, %v261, 0.0
      %267 = vadd.xlane.f32.xlu0 %v266
      %v268 = vpop.xlane.xlu0 %267
      %v269 = vmul.f32 %v261, %v261
      %v270 = vsel %vm264, %v269, 0.0
      %271 = vadd.xlane.f32.xlu0 %v270
      %v272 = vpop.xlane.xlu0 %271
      %vm273 = vcmask 7168
      %v274 = vsel %vm273, %v268, %v272
      %vm275 = vcmask 15360
      %276 = vst.msk [vmem:[%s176] sm:$0xff] %vm275, %v274
      %p277 = scmp.lt.s32.totalorder %s15, 1
      %s278 = scalar_select %p277, %s15, 1
      %s279 = smul.addr %s278, 8
      %s280 = scalar_lea.vmem %s2, %s279
      %p281 = scmp.lt.s32.totalorder %s15, 1
      %s282 = scalar_select %p281, %s15, 1
      %s283 = smul.addr %s282, 8
      %s284 = scalar_lea.vmem %s3, %s283
      // Predicated region
      $region29: #{convolution_block.3} parent=27 // pred_check
        %p285 = pneg %p80
      $region30: #{convolution_block.3} parent=27 // pred_check_branch
        %287 = sbr.rel (%p285) target = $region32
      $region31: #{convolution_block.3} parent=27 // pred_region
        _
      $region32: #{convolution_block.3} parent=27 // pred_fallthru
        _
      // Predicated region
      $region33: #{convolution_block.3} parent=27 // pred_check
        %p288 = pneg %p106
      $region34: #{convolution_block.3} parent=27 // pred_check_branch
        %290 = sbr.rel (%p288) target = $region36
      $region35: #{convolution_block.3} parent=27 // pred_region
        _
      $region36: #{convolution_block.3} parent=27 // pred_fallthru
        _
    $region28: #{convolution_block.3} parent=5 // pred_fallthru
      _
    %p291 = scmp.le.s32.totalorder 2, %s10
    // Predicated region
    $region37: #{convolution_block.3} parent=5 // pred_check
      %p292 = pneg %p291
    $region38: #{convolution_block.3} parent=5 // pred_check_branch
      %294 = sbr.rel (%p292) target = $region40
    $region39: #{convolution_block.3} parent=5 // pred_region
      %s295 = ssub.s32 %s10, 2
      // Predicated region
      $region41: #{convolution_block.3} parent=39 // pred_check
        %p296 = pneg %p86
      $region42: #{convolution_block.3} parent=39 // pred_check_branch
        %298 = sbr.rel (%p296) target = $region44
      $region43: #{convolution_block.3} parent=39 // pred_region
        %p299 = scmp.lt.s32.totalorder %s16, 1
        %s300 = scalar_select %p299, %s16, 1
        %s301 = smul.addr %s300, 8
        %s302 = scalar_lea.vmem %s2, %s301
      $region44: #{convolution_block.3} parent=39 // pred_fallthru
        _
      // Predicated region
      $region45: #{convolution_block.3} parent=39 // pred_check
        %p303 = pneg %p112
      $region46: #{convolution_block.3} parent=39 // pred_check_branch
        %305 = sbr.rel (%p303) target = $region48
      $region47: #{convolution_block.3} parent=39 // pred_region
        %p306 = scmp.lt.s32.totalorder %s16, 1
        %s307 = scalar_select %p306, %s16, 1
        %s308 = smul.addr %s307, 8
        %s309 = scalar_lea.vmem %s3, %s308
      $region48: #{convolution_block.3} parent=39 // pred_fallthru
        _
    $region40: #{convolution_block.3} parent=5 // pred_fallthru
      _
  $region6: #{convolution_block.3} parent=0 // loop_footer
    %s14 = sadd.s32 1, %s10
  $region7: #{convolution_block.3} parent=0 // loop_footer_branch
    %9 = sbr.rel target = $region3
  $region8: #{convolution_block.3} parent=0 // loop_exit
    _

// kernel: convolution_block.5
$region0: #{convolution_block.5}
  #allocation0 [shape = 'u32[]', space=smem, size = 0x4, offset = 0x4, fixed_abs, tag = 'smem constant byte address 0x4 - core index']
  #allocation1 [shape = 'u32[144,128]{1,0:T(1,128)}', space=vmem, size = 0x12000, scoped, tag = 'internal scratch']
  %s0 = inlined_call_operand.vmem [shape: f32[2,8,6], index: 0, kind: input, shape index: {}]
  %s1 = inlined_call_operand.vmem [shape: f32[8,2], index: 1, kind: input, shape index: {}]
  %s2 = inlined_call_operand.vmem [shape: f32[2,8,6], index: 2, kind: output, shape index: {}]
  %s3 = sld [smem:[#allocation0]]
  $region41: #{convolution_block.5} parent=0
    _
  %s5 = ssub.s32 1, %s3
  %s6 = scalar_select 0, %s5, %s3
  loop: start=0, step=1, limit=4
  $region2: #{convolution_block.5} parent=0 // loop_pre_header
    _
  $region3: #{convolution_block.5} parent=0 // loop_header
    %s8 = sphi 0, %s12
    %p9 = scmp.ge.s32.totalorder %s8, 4
    %s18 = sphi 0, %s20
    %s21 = sphi 0, %s18
    %s22 = sphi 0, %s21
    %s38 = sphi 0, %s22
    %s42 = sphi 0, %s42
    %s44 = sphi 0, %s42
    %s45 = sphi 0, %s44
    %s59 = sphi 0, %s45
    %s65 = sphi 0, %s67
    %s68 = sphi 0, %s65
    %s69 = sphi 0, %s68
    %s85 = sphi 0, %s69
  $region4: #{convolution_block.5} parent=0 // loop_header_branch
    %11 = sbr.rel (%p9) target = $region8
  $region5: #{convolution_block.5} parent=0 // loop_body
    %s13 = ssub.s32 %s8, 1
    %s14 = ssub.s32 %s8, 2
    %s15 = sadd.s32 %s8, 1
    %s16 = ssub.s32 %s8, %s15
    %p17 = scmp.eq.s32.totalorder %s16, 0
    %s19 = sadd.s32 %s18, 1
    %s20 = scalar_select %p17, %s18, %s19
    %p23 = pneg %p17
    %p24 = scmp.eq.s32.totalorder %s8, 1
    %p25 = por %p23, %p24
    %p26 = scmp.ne.s32.totalorder %s18, %s21
    %p27 = scmp.eq.s32.totalorder %s8, 0
    %p28 = por %p26, %p27
    %p29 = scmp.ne.s32.totalorder %s18, %s21
    %p30 = scmp.eq.s32.totalorder %s13, 1
    %p31 = por %p29, %p30
    %p32 = scmp.ne.s32.totalorder %s21, %s22
    %p33 = scmp.eq.s32.totalorder %s13, 0
    %p34 = por %p32, %p33
    %p35 = scmp.ne.s32.totalorder %s21, %s22
    %p36 = scmp.eq.s32.totalorder %s14, 1
    %p37 = por %p35, %p36
    %p39 = scmp.ne.s32.totalorder %s22, %s38
    %p40 = scmp.eq.s32.totalorder %s14, 0
    %p41 = por %p39, %p40
    %s43 = sadd.s32 %s42, 1
    %p46 = scmp.eq.s32.totalorder %s8, 1
    %p47 = scmp.ne.s32.totalorder %s42, %s44
    %p48 = scmp.eq.s32.totalorder %s8, 0
    %p49 = por %p47, %p48
    %p50 = scmp.ne.s32.totalorder %s42, %s44
    %p51 = scmp.eq.s32.totalorder %s13, 1
    %p52 = por %p50, %p51
    %p53 = scmp.ne.s32.totalorder %s44, %s45
    %p54 = scmp.eq.s32.totalorder %s13, 0
    %p55 = por %p53, %p54
    %p56 = scmp.ne.s32.totalorder %s44, %s45
    %p57 = scmp.eq.s32.totalorder %s14, 1
    %p58 = por %p56, %p57
    %p60 = scmp.ne.s32.totalorder %s45, %s59
    %p61 = scmp.eq.s32.totalorder %s14, 0
    %p62 = por %p60, %p61
    %s63 = ssub.s32 %s8, %s15
    %p64 = scmp.eq.s32.totalorder %s63, 0
    %s66 = sadd.s32 %s65, 1
    %s67 = scalar_select %p64, %s65, %s66
    %p70 = pneg %p64
    %p71 = scmp.eq.s32.totalorder %s8, 1
    %p72 = por %p70, %p71
    %p73 = scmp.ne.s32.totalorder %s65, %s68
    %p74 = scmp.eq.s32.totalorder %s8, 0
    %p75 = por %p73, %p74
    %p76 = scmp.ne.s32.totalorder %s65, %s68
    %p77 = scmp.eq.s32.totalorder %s13, 1
    %p78 = por %p76, %p77
    %p79 = scmp.ne.s32.totalorder %s68, %s69
    %p80 = scmp.eq.s32.totalorder %s13, 0
    %p81 = por %p79, %p80
    %p82 = scmp.ne.s32.totalorder %s68, %s69
    %p83 = scmp.eq.s32.totalorder %s14, 1
    %p84 = por %p82, %p83
    %p86 = scmp.ne.s32.totalorder %s69, %s85
    %p87 = scmp.eq.s32.totalorder %s14, 0
    %p88 = por %p86, %p87
    %p89 = scmp.le.s32.totalorder 1, %s8
    %p90 = scmp.lt.s32.totalorder %s8, 3
    %p91 = pnand %p89, %p90
    %p92 = pneg %p91
    // Predicated region
    $region9: #{convolution_block.5} parent=5 // pred_check
      _
    $region10: #{convolution_block.5} parent=5 // pred_check_branch
      %94 = sbr.rel (%p91) target = $region12
    $region11: #{convolution_block.5} parent=5 // pred_region
      %s95 = ssub.s32 %s8, 1
      // Predicated region
      $region13: #{convolution_block.5} parent=11 // pred_check
        %p96 = pneg %p55
      $region14: #{convolution_block.5} parent=11 // pred_check_branch
        %98 = sbr.rel (%p96) target = $region16
      $region15: #{convolution_block.5} parent=11 // pred_region
        _
      $region16: #{convolution_block.5} parent=11 // pred_fallthru
        _
    $region12: #{convolution_block.5} parent=5 // pred_fallthru
      _
    %p99 = scmp.lt.s32.totalorder %s8, 2
    // Predicated region
    $region17: #{convolution_block.5} parent=5 // pred_check
      %p100 = pneg %p99
    $region18: #{convolution_block.5} parent=5 // pred_check_branch
      %102 = sbr.rel (%p100) target = $region20
    $region19: #{convolution_block.5} parent=5 // pred_region
      // Predicated region
      $region21: #{convolution_block.5} parent=19 // pred_check
        %p103 = pneg %p28
      $region22: #{convolution_block.5} parent=19 // pred_check_branch
        %105 = sbr.rel (%p103) target = $region24
      $region23: #{convolution_block.5} parent=19 // pred_region
        %p106 = scmp.lt.s32.totalorder %s8, 1
        %s107 = scalar_select %p106, %s8, 1
        %s108 = smul.addr %s107, 8
        %s109 = scalar_lea.vmem %s0, %s108
      $region24: #{convolution_block.5} parent=19 // pred_fallthru
        _
    $region20: #{convolution_block.5} parent=5 // pred_fallthru
      _
    %p110 = scmp.le.s32.totalorder 1, %s8
    %p111 = scmp.lt.s32.totalorder %s8, 3
    %p112 = pnand %p110, %p111
    %p113 = pneg %p112
    // Predicated region
    $region25: #{convolution_block.5} parent=5 // pred_check
      _
    $region26: #{convolution_block.5} parent=5 // pred_check_branch
      %115 = sbr.rel (%p112) target = $region28
    $region27: #{convolution_block.5} parent=5 // pred_region
      %s116 = ssub.s32 %s8, 1
      %p117 = scmp.lt.s32.totalorder %s13, 1
      %s118 = scalar_select %p117, %s13, 1
      %s119 = smul.addr %s118, 8
      %s120 = scalar_lea.vmem %s0, %s119
      %p121 = pneg %p34
      %p122 = pneg %p31
      %p123 = pneg %p55
      %p124 = pneg %p52
      %p125 = pneg %p81
      %p126 = pneg %p78
      %p127 = scmp.lt.s32.totalorder %s13, 1
      %s128 = scalar_select %p127, %s13, 1
      %s129 = smul.addr %s128, 8
      %s130 = scalar_lea.vmem %s2, %s129
      %p131 = scmp.lt.s32.totalorder %s13, 1
      %s132 = scalar_select %p131, %s13, 1
      %s133 = smul.addr %s132, 8
      %s134 = scalar_lea.vmem %s0, %s133
      %p135 = scmp.lt.s32.totalorder %s13, 1
      %s136 = scalar_select %p135, %s13, 1
      %s137 = smul.addr %s136, 8
      %s138 = scalar_lea.vmem %s2, %s137
      %v139 = vld [vmem:[%s134] sm:$0xff]
      %v140 = vld [vmem:[%s1] sm:$0xff]
      %142 = vset.pattern.permute.xlu0 0
      %143 = vperm.xlu0 %142, %v140
      %v144 = vpop.permute.xlu0 %143
      %v146 = vmul.f32 %v139, %v144
      %147 = vset.pattern.permute.xlu0 1
      %148 = vperm.xlu0 %147, %v140
      %v149 = vpop.permute.xlu0 %148
      %v151 = vadd.f32 %v146, %v149
      %vm152 = vcmask 48128
      %153 = vst.msk [vmem:[%s138] sm:$0xff] %vm152, %v151
      %p154 = scmp.lt.s32.totalorder %s13, 1
      %s155 = scalar_select %p154, %s13, 1
      %s156 = smul.addr %s155, 8
      %s157 = scalar_lea.vmem %s2, %s156
      // Predicated region
      $region29: #{convolution_block.5} parent=27 // pred_check
        %p158 = pneg %p78
      $region30: #{convolution_block.5} parent=27 // pred_check_branch
        %160 = sbr.rel (%p158) target = $region32
      $region31: #{convolution_block.5} parent=27 // pred_region
        _
      $region32: #{convolution_block.5} parent=27 // pred_fallthru
        _
    $region28: #{convolution_block.5} parent=5 // pred_fallthru
      _
    %p161 = scmp.le.s32.totalorder 2, %s8
    // Predicated region
    $region33: #{convolution_block.5} parent=5 // pred_check
      %p162 = pneg %p161
    $region34: #{convolution_block.5} parent=5 // pred_check_branch
      %164 = sbr.rel (%p162) target = $region36
    $region35: #{convolution_block.5} parent=5 // pred_region
      %s165 = ssub.s32 %s8, 2
      // Predicated region
      $region37: #{convolution_block.5} parent=35 // pred_check
        %p166 = pneg %p84
      $region38: #{convolution_block.5} parent=35 // pred_check_branch
        %168 = sbr.rel (%p166) target = $region40
      $region39: #{convolution_block.5} parent=35 // pred_region
        %p169 = scmp.lt.s32.totalorder %s14, 1
        %s170 = scalar_select %p169, %s14, 1
        %s171 = smul.addr %s170, 8
        %s172 = scalar_lea.vmem %s2, %s171
      $region40: #{convolution_block.5} parent=35 // pred_fallthru
        _
    $region36: #{convolution_block.5} parent=5 // pred_fallthru
      _
  $region6: #{convolution_block.5} parent=0 // loop_footer
    %s12 = sadd.s32 1, %s8
  $region7: #{convolution_block.5} parent=0 // loop_footer_branch
    %7 = sbr.rel target = $region3
  $region8: #{convolution_block.5} parent=0 // loop_exit
    _

// kernel: convolution_block.4
$region0: #{convolution_block.4}
  #allocation0 [shape = 'u32[]', space=smem, size = 0x4, offset = 0x4, fixed_abs, tag = 'smem constant byte address 0x4 - core index']
  #allocation1 [shape = 'u32[144,128]{1,0:T(1,128)}', space=vmem, size = 0x12000, scoped, tag = 'internal scratch']
  %s0 = inlined_call_operand.vmem [shape: f32[2,8,14], index: 0, kind: input, shape index: {}]
  %s1 = inlined_call_operand.vmem [shape: f32[8,2], index: 1, kind: input, shape index: {}]
  %s2 = inlined_call_operand.vmem [shape: f32[2,8,6], index: 2, kind: output, shape index: {0}]
  %s3 = inlined_call_operand.vmem [shape: f32[2,8,2], index: 3, kind: output, shape index: {1}]
  %4 = xla_tuple %s2, %s3
  %s5 = sld [smem:[#allocation0]]
  $region49: #{convolution_block.4} parent=0
    _
  %s7 = ssub.s32 1, %s5
  %s8 = scalar_select 0, %s7, %s5
  loop: start=0, step=1, limit=4
  $region2: #{convolution_block.4} parent=0 // loop_pre_header
    _
  $region3: #{convolution_block.4} parent=0 // loop_header
    %s10 = sphi 0, %s14
    %p11 = scmp.ge.s32.totalorder %s10, 4
    %s20 = sphi 0, %s22
    %s23 = sphi 0, %s20
    %s24 = sphi 0, %s23
    %s40 = sphi 0, %s24
    %s44 = sphi 0, %s44
    %s46 = sphi 0, %s44
    %s47 = sphi 0, %s46
    %s61 = sphi 0, %s47
    %s67 = sphi 0, %s69
    %s70 = sphi 0, %s67
    %s71 = sphi 0, %s70
    %s87 = sphi 0, %s71
    %s93 = sphi 0, %s95
    %s96 = sphi 0, %s93
    %s97 = sphi 0, %s96
    %s113 = sphi 0, %s97
  $region4: #{convolution_block.4} parent=0 // loop_header_branch
    %13 = sbr.rel (%p11) target = $region8
  $region5: #{convolution_block.4} parent=0 // loop_body
    %s15 = ssub.s32 %s10, 1
    %s16 = ssub.s32 %s10, 2
    %s17 = sadd.s32 %s10, 1
    %s18 = ssub.s32 %s10, %s17
    %p19 = scmp.eq.s32.totalorder %s18, 0
    %s21 = sadd.s32 %s20, 1
    %s22 = scalar_select %p19, %s20, %s21
    %p25 = pneg %p19
    %p26 = scmp.eq.s32.totalorder %s10, 1
    %p27 = por %p25, %p26
    %p28 = scmp.ne.s32.totalorder %s20, %s23
    %p29 = scmp.eq.s32.totalorder %s10, 0
    %p30 = por %p28, %p29
    %p31 = scmp.ne.s32.totalorder %s20, %s23
    %p32 = scmp.eq.s32.totalorder %s15, 1
    %p33 = por %p31, %p32
    %p34 = scmp.ne.s32.totalorder %s23, %s24
    %p35 = scmp.eq.s32.totalorder %s15, 0
    %p36 = por %p34, %p35
    %p37 = scmp.ne.s32.totalorder %s23, %s24
    %p38 = scmp.eq.s32.totalorder %s16, 1
    %p39 = por %p37, %p38
    %p41 = scmp.ne.s32.totalorder %s24, %s40
    %p42 = scmp.eq.s32.totalorder %s16, 0
    %p43 = por %p41, %p42
    %s45 = sadd.s32 %s44, 1
    %p48 = scmp.eq.s32.totalorder %s10, 1
    %p49 = scmp.ne.s32.totalorder %s44, %s46
    %p50 = scmp.eq.s32.totalorder %s10, 0
    %p51 = por %p49, %p50
    %p52 = scmp.ne.s32.totalorder %s44, %s46
    %p53 = scmp.eq.s32.totalorder %s15, 1
    %p54 = por %p52, %p53
    %p55 = scmp.ne.s32.totalorder %s46, %s47
    %p56 = scmp.eq.s32.totalorder %s15, 0
    %p57 = por %p55, %p56
    %p58 = scmp.ne.s32.totalorder %s46, %s47
    %p59 = scmp.eq.s32.totalorder %s16, 1
    %p60 = por %p58, %p59
    %p62 = scmp.ne.s32.totalorder %s47, %s61
    %p63 = scmp.eq.s32.totalorder %s16, 0
    %p64 = por %p62, %p63
    %s65 = ssub.s32 %s10, %s17
    %p66 = scmp.eq.s32.totalorder %s65, 0
    %s68 = sadd.s32 %s67, 1
    %s69 = scalar_select %p66, %s67, %s68
    %p72 = pneg %p66
    %p73 = scmp.eq.s32.totalorder %s10, 1
    %p74 = por %p72, %p73
    %p75 = scmp.ne.s32.totalorder %s67, %s70
    %p76 = scmp.eq.s32.totalorder %s10, 0
    %p77 = por %p75, %p76
    %p78 = scmp.ne.s32.totalorder %s67, %s70
    %p79 = scmp.eq.s32.totalorder %s15, 1
    %p80 = por %p78, %p79
    %p81 = scmp.ne.s32.totalorder %s70, %s71
    %p82 = scmp.eq.s32.totalorder %s15, 0
    %p83 = por %p81, %p82
    %p84 = scmp.ne.s32.totalorder %s70, %s71
    %p85 = scmp.eq.s32.totalorder %s16, 1
    %p86 = por %p84, %p85
    %p88 = scmp.ne.s32.totalorder %s71, %s87
    %p89 = scmp.eq.s32.totalorder %s16, 0
    %p90 = por %p88, %p89
    %s91 = ssub.s32 %s10, %s17
    %p92 = scmp.eq.s32.totalorder %s91, 0
    %s94 = sadd.s32 %s93, 1
    %s95 = scalar_select %p92, %s93, %s94
    %p98 = pneg %p92
    %p99 = scmp.eq.s32.totalorder %s10, 1
    %p100 = por %p98, %p99
    %p101 = scmp.ne.s32.totalorder %s93, %s96
    %p102 = scmp.eq.s32.totalorder %s10, 0
    %p103 = por %p101, %p102
    %p104 = scmp.ne.s32.totalorder %s93, %s96
    %p105 = scmp.eq.s32.totalorder %s15, 1
    %p106 = por %p104, %p105
    %p107 = scmp.ne.s32.totalorder %s96, %s97
    %p108 = scmp.eq.s32.totalorder %s15, 0
    %p109 = por %p107, %p108
    %p110 = scmp.ne.s32.totalorder %s96, %s97
    %p111 = scmp.eq.s32.totalorder %s16, 1
    %p112 = por %p110, %p111
    %p114 = scmp.ne.s32.totalorder %s97, %s113
    %p115 = scmp.eq.s32.totalorder %s16, 0
    %p116 = por %p114, %p115
    %p117 = scmp.le.s32.totalorder 1, %s10
    %p118 = scmp.lt.s32.totalorder %s10, 3
    %p119 = pnand %p117, %p118
    %p120 = pneg %p119
    // Predicated region
    $region9: #{convolution_block.4} parent=5 // pred_check
      _
    $region10: #{convolution_block.4} parent=5 // pred_check_branch
      %122 = sbr.rel (%p119) target = $region12
    $region11: #{convolution_block.4} parent=5 // pred_region
      %s123 = ssub.s32 %s10, 1
      // Predicated region
      $region13: #{convolution_block.4} parent=11 // pred_check
        %p124 = pneg %p57
      $region14: #{convolution_block.4} parent=11 // pred_check_branch
        %126 = sbr.rel (%p124) target = $region16
      $region15: #{convolution_block.4} parent=11 // pred_region
        _
      $region16: #{convolution_block.4} parent=11 // pred_fallthru
        _
    $region12: #{convolution_block.4} parent=5 // pred_fallthru
      _
    %p127 = scmp.lt.s32.totalorder %s10, 2
    // Predicated region
    $region17: #{convolution_block.4} parent=5 // pred_check
      %p128 = pneg %p127
    $region18: #{convolution_block.4} parent=5 // pred_check_branch
      %130 = sbr.rel (%p128) target = $region20
    $region19: #{convolution_block.4} parent=5 // pred_region
      // Predicated region
      $region21: #{convolution_block.4} parent=19 // pred_check
        %p131 = pneg %p30
      $region22: #{convolution_block.4} parent=19 // pred_check_branch
        %133 = sbr.rel (%p131) target = $region24
      $region23: #{convolution_block.4} parent=19 // pred_region
        %p134 = scmp.lt.s32.totalorder %s10, 1
        %s135 = scalar_select %p134, %s10, 1
        %s136 = smul.addr %s135, 8
        %s137 = scalar_lea.vmem %s0, %s136
      $region24: #{convolution_block.4} parent=19 // pred_fallthru
        _
    $region20: #{convolution_block.4} parent=5 // pred_fallthru
      _
    %p138 = scmp.le.s32.totalorder 1, %s10
    %p139 = scmp.lt.s32.totalorder %s10, 3
    %p140 = pnand %p138, %p139
    %p141 = pneg %p140
    // Predicated region
    $region25: #{convolution_block.4} parent=5 // pred_check
      _
    $region26: #{convolution_block.4} parent=5 // pred_check_branch
      %143 = sbr.rel (%p140) target = $region28
    $region27: #{convolution_block.4} parent=5 // pred_region
      %s144 = ssub.s32 %s10, 1
      %p145 = scmp.lt.s32.totalorder %s15, 1
      %s146 = scalar_select %p145, %s15, 1
      %s147 = smul.addr %s146, 8
      %s148 = scalar_lea.vmem %s0, %s147
      %p149 = pneg %p36
      %p150 = pneg %p33
      %p151 = pneg %p57
      %p152 = pneg %p54
      %p153 = pneg %p83
      %p154 = pneg %p80
      %p155 = scmp.lt.s32.totalorder %s15, 1
      %s156 = scalar_select %p155, %s15, 1
      %s157 = smul.addr %s156, 8
      %s158 = scalar_lea.vmem %s2, %s157
      %p159 = pneg %p109
      %p160 = pneg %p106
      %p161 = scmp.lt.s32.totalorder %s15, 1
      %s162 = scalar_select %p161, %s15, 1
      %s163 = smul.addr %s162, 8
      %s164 = scalar_lea.vmem %s3, %s163
      %p165 = scmp.lt.s32.totalorder %s15, 1
      %s166 = scalar_select %p165, %s15, 1
      %s167 = smul.addr %s166, 8
      %s168 = scalar_lea.vmem %s0, %s167
      %p169 = scmp.lt.s32.totalorder %s15, 1
      %s170 = scalar_select %p169, %s15, 1
      %s171 = smul.addr %s170, 8
      %s172 = scalar_lea.vmem %s2, %s171
      %p173 = scmp.lt.s32.totalorder %s15, 1
      %s174 = scalar_select %p173, %s15, 1
      %s175 = smul.addr %s174, 8
      %s176 = scalar_lea.vmem %s3, %s175
      %v177 = vld [vmem:[%s168] sm:$0xff]
      %v178 = vld [vmem:[%s1] sm:$0xff]
      %180 = vset.pattern.permute.xlu0 0
      %181 = vperm.xlu0 %180, %v178
      %v182 = vpop.permute.xlu0 %181
      %v184 = vmul.f32 %v177, %v182
      %185 = vset.pattern.permute.xlu0 1
      %186 = vperm.xlu0 %185, %v178
      %v187 = vpop.permute.xlu0 %186
      %v189 = vadd.f32 %v184, %v187
      %v190 = vmax.f32 %v189, 0.0
      %192 = vrot.lane.b32.xlu0 %v190, 127
      %v193 = vpop.permute.xlu0 %192
      %v195 = vmax.f32 %v190, %v193
      %197 = vrot.lane.b32.xlu0 %v195, 127
      %v198 = vpop.permute.xlu0 %197
      %v200 = vmax.f32 %v190, %v198
      %v201 = vlaneseq
      %v202 = vshrl.u32 %v201, 7
      %v203 = vadd.s32 %v202, 8
      %v204 = vlaneseq
      %v205 = vand.u32 %v204, 127
      %v206 = vmul.u32 %v205, 2
      %vm207 = vcmp.eq.s32.totalorder %v202, %v206
      %vm208 = vcmp.eq.s32.totalorder %v203, %v206
      %v209 = vsel %vm207, 1, 0
      %v210 = vsel %vm208, 1, 0
      %v211 = vcvt.s32.f32 %v209
      %v212 = vcvt.s32.f32 %v210
      %vm213 = vcmask 89088
      %v215 = vsel %vm213, %v200, 0
      %vm217 = vcmask 1042432
      %v219 = vsel %vm217, %v212, 0
      %221 = vmatprep.subr.mxu0 0.0
      %222 = vmatpush1.msra.mxu0 0.0
      %223 = vmatprep.subr.mxu0 0.0
      %224 = vmatpush1.msra.mxu0 0.0
      %225 = vmatprep.subr.mxu0 0.0
      %226 = vmatpush1.msra.mxu0 0.0
      %227 = vmatprep.subr.mxu0 0.0
      %228 = vmatpush1.msra.mxu0 0.0
      %229 = vmatprep.subr.mxu0 0.0
      %230 = vmatpush1.msra.mxu0 0.0
      %231 = vmatprep.subr.mxu0 0.0
      %232 = vmatpush1.msra.mxu0 0.0
      %233 = vmatprep.subr.mxu0 0.0
      %234 = vmatpush1.msra.mxu0 0.0
      %235 = vmatprep.subr.mxu0 0.0
      %236 = vmatpush1.msra.mxu0 0.0
      %237 = vmatprep.subr.mxu0 0.0
      %238 = vmatpush1.msra.mxu0 0.0
      %239 = vmatprep.subr.mxu0 0.0
      %240 = vmatpush1.msra.mxu0 0.0
      %241 = vmatprep.subr.mxu0 0.0
      %242 = vmatpush1.msra.mxu0 0.0
      %243 = vmatprep.subr.mxu0 0.0
      %244 = vmatpush1.msra.mxu0 0.0
      %245 = vmatprep.subr.mxu0 0.0
      %246 = vmatpush1.msra.mxu0 0.0
      %247 = vmatprep.subr.mxu0 0.0
      %248 = vmatpush1.msra.mxu0 0.0
      %249 = vmatprep.subr.mxu0 0.0
      %250 = vmatpush1.msra.mxu0 %v219
      %251 = vmatprep.subr.mxu0 0.0
      %252 = vmatpush1.msra.mxu0 %v211
      %253 = vmatprep.subr.mxu0 0.0
      %254 = vmatpush2.msra.mxu0 0.0
      %255 = vmatprep.subr.mxu0 0.0
      %256 = vmatpush2.msra.mxu0 0.0
      %257 = vmatprep.subr.mxu0 0.0
      %258 = vmatpush2.msra.mxu0 0.0
      %259 = vmatprep.subr.mxu0 0.0
      %260 = vmatpush2.msra.mxu0 0.0
      %261 = vmatprep.subr.mxu0 0.0
      %262 = vmatpush2.msra.mxu0 0.0
      %263 = vmatprep.subr.mxu0 0.0
      %264 = vmatpush2.msra.mxu0 0.0
      %265 = vmatprep.subr.mxu0 0.0
      %266 = vmatpush2.msra.mxu0 0.0
      %267 = vmatprep.subr.mxu0 0.0
      %268 = vmatpush2.msra.mxu0 0.0
      %269 = vmatprep.subr.mxu0 0.0
      %270 = vmatpush2.msra.mxu0 0.0
      %271 = vmatprep.subr.mxu0 0.0
      %272 = vmatpush2.msra.mxu0 0.0
      %273 = vmatprep.subr.mxu0 0.0
      %274 = vmatpush2.msra.mxu0 0.0
      %275 = vmatprep.subr.mxu0 0.0
      %276 = vmatpush2.msra.mxu0 0.0
      %277 = vmatprep.subr.mxu0 0.0
      %278 = vmatpush2.msra.mxu0 0.0
      %279 = vmatprep.subr.mxu0 0.0
      %280 = vmatpush2.msra.mxu0 0.0
      %281 = vmatprep.subr.mxu0 0.0
      %282 = vmatpush2.msra.mxu0 0.0
      %283 = vmatprep.subr.mxu0 0.0
      %284 = vmatpush2.msra.mxu0 0.0
      %285 = vmatprep.mubr.f32.mxu0 0.0
      %286 = vmatmul.mubr.f32.gmra.mxu0 %v215
      %v287 = vpop.f32.mrf.mxu0
      %v288 = vadd.f32 0.0, %v287
      %v289 = vpop.f32.mrf.mxu0
      %290 = vdwg.mxu0
      %vm291 = vcmask 48128
      %292 = vst.msk [vmem:[%s172] sm:$0xff] %vm291, %v288
      %v293 = vsel %vm291, %v288, 0.0
      %294 = vadd.xlane.f32.xlu0 %v293
      %v295 = vpop.xlane.xlu0 %294
      %v296 = vmul.f32 %v288, %v288
      %v297 = vsel %vm291, %v296, 0.0
      %298 = vadd.xlane.f32.xlu0 %v297
      %v299 = vpop.xlane.xlu0 %298
      %vm300 = vcmask 7168
      %v301 = vsel %vm300, %v295, %v299
      %vm302 = vcmask 15360
      %303 = vst.msk [vmem:[%s176] sm:$0xff] %vm302, %v301
      %p304 = scmp.lt.s32.totalorder %s15, 1
      %s305 = scalar_select %p304, %s15, 1
      %s306 = smul.addr %s305, 8
      %s307 = scalar_lea.vmem %s2, %s306
      %p308 = scmp.lt.s32.totalorder %s15, 1
      %s309 = scalar_select %p308, %s15, 1
      %s310 = smul.addr %s309, 8
      %s311 = scalar_lea.vmem %s3, %s310
      // Predicated region
      $region29: #{convolution_block.4} parent=27 // pred_check
        %p312 = pneg %p80
      $region30: #{convolution_block.4} parent=27 // pred_check_branch
        %314 = sbr.rel (%p312) target = $region32
      $region31: #{convolution_block.4} parent=27 // pred_region
        _
      $region32: #{convolution_block.4} parent=27 // pred_fallthru
        _
      // Predicated region
      $region33: #{convolution_block.4} parent=27 // pred_check
        %p315 = pneg %p106
      $region34: #{convolution_block.4} parent=27 // pred_check_branch
        %317 = sbr.rel (%p315) target = $region36
      $region35: #{convolution_block.4} parent=27 // pred_region
        _
      $region36: #{convolution_block.4} parent=27 // pred_fallthru
        _
    $region28: #{convolution_block.4} parent=5 // pred_fallthru
      _
    %p318 = scmp.le.s32.totalorder 2, %s10
    // Predicated region
    $region37: #{convolution_block.4} parent=5 // pred_check
      %p319 = pneg %p318
    $region38: #{convolution_block.4} parent=5 // pred_check_branch
      %321 = sbr.rel (%p319) target = $region40
    $region39: #{convolution_block.4} parent=5 // pred_region
      %s322 = ssub.s32 %s10, 2
      // Predicated region
      $region41: #{convolution_block.4} parent=39 // pred_check
        %p323 = pneg %p86
      $region42: #{convolution_block.4} parent=39 // pred_check_branch
        %325 = sbr.rel (%p323) target = $region44
      $region43: #{convolution_block.4} parent=39 // pred_region
        %p326 = scmp.lt.s32.totalorder %s16, 1
        %s327 = scalar_select %p326, %s16, 1
        %s328 = smul.addr %s327, 8
        %s329 = scalar_lea.vmem %s2, %s328
      $region44: #{convolution_block.4} parent=39 // pred_fallthru
        _
      // Predicated region
      $region45: #{convolution_block.4} parent=39 // pred_check
        %p330 = pneg %p112
      $region46: #{convolution_block.4} parent=39 // pred_check_branch
        %332 = sbr.rel (%p330) target = $region48
      $region47: #{convolution_block.4} parent=39 // pred_region
        %p333 = scmp.lt.s32.totalorder %s16, 1
        %s334 = scalar_select %p333, %s16, 1
        %s335 = smul.addr %s334, 8
        %s336 = scalar_lea.vmem %s3, %s335
      $region48: #{convolution_block.4} parent=39 // pred_fallthru
        _
    $region40: #{convolution_block.4} parent=5 // pred_fallthru
      _
  $region6: #{convolution_block.4} parent=0 // loop_footer
    %s14 = sadd.s32 1, %s10
  $region7: #{convolution_block.4} parent=0 // loop_footer_branch
    %9 = sbr.rel target = $region3
  $region8: #{convolution_block.4} parent=0 // loop_exit
    _

</llo_original>
